<compile_context>
chip_gen: v6e
topology: v6e:2x2x1
jax: 0.10.0
libtpu: 0.0.40
codegen_flags: <defaults>
</compile_context>

<pallas_src>
import math

import jax
import jax.numpy as jnp
from jax.experimental import pallas as pl
from jax.experimental.pallas import tpu as pltpu


# ----------------------------------------------------------------------------
# Buffer setup — deterministic, done once in plain JAX (matches the PyTorch init).
# ----------------------------------------------------------------------------
def make_positional_encoding(d_model: int, max_len: int = 50,
                             dtype=jnp.float32) -> jnp.ndarray:
    assert d_model % 2 == 0, "d_model must be even (same constraint as the torch module)"
    position = jnp.arange(max_len, dtype=jnp.float32)[:, None]               # (max_len, 1)
    div_term = jnp.exp(
        jnp.arange(0, d_model, 2, dtype=jnp.float32) * (-math.log(10000.0) / d_model)
    )                                                                         # (d_model/2,)
    pe = jnp.zeros((max_len, d_model), dtype=jnp.float32)
    pe = pe.at[:, 0::2].set(jnp.sin(position * div_term))
    pe = pe.at[:, 1::2].set(jnp.cos(position * div_term))
    # matches torch: pe.unsqueeze(0).transpose(0, 1) -> (max_len, 1, d_model)
    return pe[:, None, :].astype(dtype)


# ----------------------------------------------------------------------------
# Kernel: broadcasted elementwise add over the batch (sublane) dimension.
# Kept intentionally trivial — the binding resource is HBM DMA on all of
# v5e / v6e / v7x; the (tS, 1, D) sublane broadcast of pe is free VPU filler.
# ----------------------------------------------------------------------------
def _pe_add_kernel(x_ref, pe_ref, o_ref):
    # x_ref / o_ref: (tS, tB, D) VMEM tiles; pe_ref: (tS, 1, D) -> broadcast over batch.
    o_ref[...] = x_ref[...] + pe_ref[...]


_TARGET_TILE_BYTES = 1 << 20          # ~1 MiB of x per grid step (~85% of HBM roofline)
_MIN_S_STEPS = 2                      # keep >=2 steps: restores pipelining + v7x megacore
_VMEM_LIMIT_BYTES = 32 * 1024 * 1024  # <= 40 MiB headroom rule on v7x (64 MiB physical);
                                      # explicit because v5e's scoped default is only 16 MiB
_MIN_PALLAS_BYTES = 1 << 20           # below this, a standalone pallas_call loses to XLA add


def _choose_tiles(S: int, B: int, D: int, itemsize: int, max_len: int):
    # Batch tile: keep the full batch on sublanes unless it is very large.
    # (Block rule: 2nd-to-last block dim must be a multiple of 8 or == B.)
    tB = B if B <= 256 else 256
    row_bytes = tB * D * itemsize
    # ~1 MiB of x per step; bigger tiles buy ~1% roofline but kill grid steps.
    tS = max(1, _TARGET_TILE_BYTES // row_bytes)
    tS = min(tS, S)
    # Guarantee at least _MIN_S_STEPS grid steps along S when the shape allows it
    # (big problems get >= 8 steps automatically from the 1 MiB cap).
    if S >= _MIN_S_STEPS:
        tS = min(tS, pl.cdiv(S, _MIN_S_STEPS))
    if tS > 8:
        tS -= tS % 8          # friendlier DMA granularity; not required for correctness
    # Clamp so the last S block never indexes pe rows past max_len
    # (avoids relying on edge-block masking for the pe operand).
    while pl.cdiv(S, tS) * tS > max_len:
        tS -= 1
    return tS, tB


def positional_encoding_forward(x: jnp.ndarray, pe: jnp.ndarray, *,
                                donate: bool = False,
                                min_pallas_bytes: int = _MIN_PALLAS_BYTES) -> jnp.ndarray:
    """x: (S, B, D); pe: (max_len, 1, D) with max_len >= S.  Returns x + pe[:S].

    donate=True writes the result back into x's buffer (only useful when the
    caller actually donates x via jax.jit donate_argnums; otherwise XLA inserts
    a defensive copy that doubles HBM traffic, so the default is off).
    """
    S, B, D = x.shape
    max_len = pe.shape[0]
    assert max_len >= S and pe.shape[1] == 1 and pe.shape[2] == D

    itemsize = jnp.dtype(x.dtype).itemsize
    total_bytes = S * B * D * itemsize
    sublane_rows = max(1, 32 // itemsize)   # 8 for f32, 16 for bf16, 32 for int8

    # ---- fallback guards: tiny problem, lane-sparse D, sublane-sparse B --------
    #  * D % 128 != 0  -> masked vst.msk partial stores, wasted lanes (biggest lever)
    #  * B < sublane   -> mostly-empty sublanes / partial store rows
    #  * tiny total    -> pallas_call launch + grid overhead dominates
    if (total_bytes < min_pallas_bytes) or (D % 128 != 0) or (B < sublane_rows):
        return (x + pe[:S].astype(x.dtype)).astype(x.dtype)

    pe = pe.astype(x.dtype)   # no-op when dtypes already match (cast once, not per step)

    tS, tB = _choose_tiles(S, B, D, itemsize, max_len)
    nS = pl.cdiv(S, tS)
    nB = pl.cdiv(B, tB)

    cost = pl.CostEstimate(
        flops=S * B * D,
        transcendentals=0,
        bytes_accessed=2 * S * B * D * itemsize + S * D * itemsize,
    )

    if nB == 1:
        # Full batch fits one tile: drop the dead grid axis so the single
        # "parallel" axis (the one with real steps) is what megacore shards.
        grid = (nS,)
        in_specs = [
            pl.BlockSpec((tS, tB, D), lambda s: (s, 0, 0)),
            pl.BlockSpec((tS, 1, D), lambda s: (s, 0, 0)),
        ]
        out_specs = pl.BlockSpec((tS, tB, D), lambda s: (s, 0, 0))
        dims = ("parallel",)
    else:
        # Batch axis fastest-varying -> pe block index constant across consecutive
        # iterations, so its VMEM tile is not re-fetched.
        grid = (nS, nB)
        in_specs = [
            pl.BlockSpec((tS, tB, D), lambda s, b: (s, b, 0)),
            pl.BlockSpec((tS, 1, D), lambda s, b: (s, 0, 0)),
        ]
        out_specs = pl.BlockSpec((tS, tB, D), lambda s, b: (s, b, 0))
        dims = ("parallel", "parallel")

    return pl.pallas_call(
        _pe_add_kernel,
        out_shape=jax.ShapeDtypeStruct((S, B, D), x.dtype),
        grid=grid,
        in_specs=in_specs,
        out_specs=out_specs,
        input_output_aliases=({0: 0} if donate else {}),
        compiler_params=pltpu.CompilerParams(
            dimension_semantics=dims,
            vmem_limit_bytes=_VMEM_LIMIT_BYTES,
        ),
        cost_estimate=cost,
    )(x, pe)


# ----------------------------------------------------------------------------
# Demo / self-check
# ----------------------------------------------------------------------------
if __name__ == "__main__":
    key = jax.random.PRNGKey(0)

    # Case 1: module-default small shape (d_model=32, seq=8, batch=2).
    # D < 128 and B < 8 -> routed through the plain-XLA fallback (by design).
    d_model, max_len, seq_len, batch = 32, 50, 8, 2
    x_small = jax.random.normal(key, (seq_len, batch, d_model), dtype=jnp.float32)
    pe_small = make_positional_encoding(d_model, max_len=max_len)
    ref_small = x_small + pe_small[:seq_len]
    out_small = jax.block_until_ready(positional_encoding_forward(x_small, pe_small))
    assert out_small.shape == x_small.shape and out_small.dtype == x_small.dtype
    assert jnp.allclose(out_small, ref_small, atol=1e-6, rtol=1e-6), "fallback mismatch"

    # Case 2: lane/sublane-friendly shape, forced through the Pallas kernel
    # (min_pallas_bytes=0) so the pallas_call path itself is exercised on TPU.
    d_model2, max_len2, seq_len2, batch2 = 128, 50, 48, 8
    x_big = jax.random.normal(jax.random.PRNGKey(0), (seq_len2, batch2, d_model2),
                              dtype=jnp.float32)
    pe_big = make_positional_encoding(d_model2, max_len=max_len2)
    ref_big = x_big + pe_big[:seq_len2]
    out_big = jax.block_until_ready(
        positional_encoding_forward(x_big, pe_big, min_pallas_bytes=0))
    assert out_big.shape == x_big.shape and out_big.dtype == x_big.dtype
    assert jnp.allclose(out_big, ref_big, atol=1e-6, rtol=1e-6), "pallas mismatch"

    print("KERNEL_OK")
</pallas_src>

<mosaic_0001>
module attributes {stable_mosaic.version = 11 : i64} {
  func.func @_pe_add_kernel(%arg0: i32, %arg1: memref<24x8x128xf32, #tpu.memory_space<vmem>>, %arg2: memref<24x1x128xf32, #tpu.memory_space<vmem>>, %arg3: memref<24x8x128xf32, #tpu.memory_space<vmem>>) attributes {dimension_semantics = [#tpu.dimension_semantics<parallel>], iteration_bounds = array<i64: 2>, scalar_prefetch = 0 : i64, scratch_operands = 0 : i64, tpu.core_type = #tpu.core_type<tc>, window_params = [{transform_indices = @transform_0, window_bounds = array<i64: 24, 8, 128>}, {transform_indices = @transform_1, window_bounds = array<i64: 24, 1, 128>}, {transform_indices = @transform_2, window_bounds = array<i64: 24, 8, 128>}]} {
    %c0 = arith.constant 0 : index
    %c0_0 = arith.constant 0 : index
    %c0_1 = arith.constant 0 : index
    %0 = vector.load %arg1[%c0, %c0_0, %c0_1] : memref<24x8x128xf32, #tpu.memory_space<vmem>>, vector<24x8x128xf32>
    %c0_2 = arith.constant 0 : index
    %c0_3 = arith.constant 0 : index
    %c0_4 = arith.constant 0 : index
    %1 = vector.load %arg2[%c0_2, %c0_3, %c0_4] : memref<24x1x128xf32, #tpu.memory_space<vmem>>, vector<24x1x128xf32>
    %2 = vector.broadcast %1 : vector<24x1x128xf32> to vector<24x8x128xf32>
    %3 = arith.addf %0, %2 : vector<24x8x128xf32>
    %c0_5 = arith.constant 0 : index
    %c0_6 = arith.constant 0 : index
    %c0_7 = arith.constant 0 : index
    %4 = vector.load %arg3[%c0_5, %c0_6, %c0_7] : memref<24x8x128xf32, #tpu.memory_space<vmem>>, vector<24x8x128xf32>
    tpu.vector_store %arg3[%c0_5, %c0_6, %c0_7], %3 {strides = array<i32>} : memref<24x8x128xf32, #tpu.memory_space<vmem>>, vector<24x8x128xf32>,
    return
  }
  func.func @transform_0(%arg0: i32) -> (i32, i32, i32) {
    %c0_i32 = arith.constant 0 : i32
    %c0_i32_0 = arith.constant 0 : i32
    %c0_i32_1 = arith.constant 0 : i32
    return %arg0, %c0_i32, %c0_i32_0 : i32, i32, i32
  }
  func.func @transform_1(%arg0: i32) -> (i32, i32, i32) {
    %c0_i32 = arith.constant 0 : i32
    %c0_i32_0 = arith.constant 0 : i32
    %c0_i32_1 = arith.constant 0 : i32
    return %arg0, %c0_i32, %c0_i32_0 : i32, i32, i32
  }
  func.func @transform_2(%arg0: i32) -> (i32, i32, i32) {
    %c0_i32 = arith.constant 0 : i32
    %c0_i32_0 = arith.constant 0 : i32
    %c0_i32_1 = arith.constant 0 : i32
    return %arg0, %c0_i32, %c0_i32_0 : i32, i32, i32
  }
}

</mosaic_0001>

<llo_original>
// kernel: tpu_custom_call.1
$region0: #{tpu_custom_call.1}
  #allocation0 [shape = 'u32[]', space=smem, size = 0x4, offset = 0x4, fixed_abs, tag = 'smem constant byte address 0x4 - core index']
  #allocation1 [shape = 'u32[144,128]{1,0:T(1,128)}', space=vmem, size = 0x12000, scoped, tag = 'internal scratch']
  %s0 = inlined_call_operand.hbm [shape: f32[48,8,128], index: 0, kind: input, shape index: {}]
  %s1 = inlined_call_operand.hbm [shape: f32[50,1,128], index: 1, kind: input, shape index: {}]
  %s2 = inlined_call_operand.hbm [shape: f32[48,8,128], index: 2, kind: output, shape index: {}]
  %s3 = sld [smem:[#allocation0]]
  $region49: #{tpu_custom_call.1} parent=0
    _
  %s5 = ssub.s32 1, %s3
  %s6 = scalar_select 0, %s5, %s3
  $region1: #{tpu_custom_call.1} parent=0
    #allocation2 [shape = 'u8[196608]{0}', space=vmem, size = 0x30000, scoped, tag = 'input window, operand 0']
    #allocation3 [shape = 's32[2]{0}', space=sflag, size = 0x8, scoped, tag = 'scoped memory for tpu_custom_call.1']
    #allocation4 [shape = 's32[2]{0}', space=sflag, size = 0x8, scoped, tag = 'scoped memory for tpu_custom_call.1']
    #allocation5 [shape = 'u8[24576]{0}', space=vmem, size = 0x6000, scoped, tag = 'input window, operand 1']
    #allocation6 [shape = 's32[2]{0}', space=sflag, size = 0x8, scoped, tag = 'scoped memory for tpu_custom_call.1']
    #allocation7 [shape = 'u8[196608]{0}', space=vmem, size = 0x30000, scoped, tag = 'output window, operand 0']
    %7 = vsyncpa [#allocation3], 0
    %s8 = scalar_lea.sflag [#allocation3], 1
    %9 = vsyncpa %s8, 0
    %10 = vsyncpa [#allocation6], 0
    %s11 = scalar_lea.sflag [#allocation6], 1
    %12 = vsyncpa %s11, 0
    %13 = vsyncpa [#allocation4], 0
    %s14 = scalar_lea.sflag [#allocation4], 1
    %15 = vsyncpa %s14, 0
    loop: start=0, step=1, limit=4
    $region2: #{tpu_custom_call.1} parent=1 // loop_pre_header
      _
    $region3: #{tpu_custom_call.1} parent=1 // loop_header
      %s17 = sphi 0, %s21
      %p18 = scmp.ge.s32.totalorder %s17, 4
      %s27 = sphi 0, %s29
      %s30 = sphi 0, %s27
      %s31 = sphi 0, %s30
      %s47 = sphi 0, %s31
      %s53 = sphi 0, %s55
      %s56 = sphi 0, %s53
      %s57 = sphi 0, %s56
      %s73 = sphi 0, %s57
      %s79 = sphi 0, %s81
      %s82 = sphi 0, %s79
      %s83 = sphi 0, %s82
      %s99 = sphi 0, %s83
    $region4: #{tpu_custom_call.1} parent=1 // loop_header_branch
      %20 = sbr.rel (%p18) target = $region8
    $region5: #{tpu_custom_call.1} parent=1 // loop_body
      %s22 = ssub.s32 %s17, 1
      %s23 = ssub.s32 %s17, 2
      %s24 = sadd.s32 %s17, 1
      %s25 = ssub.s32 %s17, %s24
      %p26 = scmp.eq.s32.totalorder %s25, 0
      %s28 = sadd.s32 %s27, 1
      %s29 = scalar_select %p26, %s27, %s28
      %p32 = pneg %p26
      %p33 = scmp.eq.s32.totalorder %s17, 1
      %p34 = por %p32, %p33
      %p35 = scmp.ne.s32.totalorder %s27, %s30
      %p36 = scmp.eq.s32.totalorder %s17, 0
      %p37 = por %p35, %p36
      %p38 = scmp.ne.s32.totalorder %s27, %s30
      %p39 = scmp.eq.s32.totalorder %s22, 1
      %p40 = por %p38, %p39
      %p41 = scmp.ne.s32.totalorder %s30, %s31
      %p42 = scmp.eq.s32.totalorder %s22, 0
      %p43 = por %p41, %p42
      %p44 = scmp.ne.s32.totalorder %s30, %s31
      %p45 = scmp.eq.s32.totalorder %s23, 1
      %p46 = por %p44, %p45
      %p48 = scmp.ne.s32.totalorder %s31, %s47
      %p49 = scmp.eq.s32.totalorder %s23, 0
      %p50 = por %p48, %p49
      %s51 = ssub.s32 %s17, %s24
      %p52 = scmp.eq.s32.totalorder %s51, 0
      %s54 = sadd.s32 %s53, 1
      %s55 = scalar_select %p52, %s53, %s54
      %p58 = pneg %p52
      %p59 = scmp.eq.s32.totalorder %s17, 1
      %p60 = por %p58, %p59
      %p61 = scmp.ne.s32.totalorder %s53, %s56
      %p62 = scmp.eq.s32.totalorder %s17, 0
      %p63 = por %p61, %p62
      %p64 = scmp.ne.s32.totalorder %s53, %s56
      %p65 = scmp.eq.s32.totalorder %s22, 1
      %p66 = por %p64, %p65
      %p67 = scmp.ne.s32.totalorder %s56, %s57
      %p68 = scmp.eq.s32.totalorder %s22, 0
      %p69 = por %p67, %p68
      %p70 = scmp.ne.s32.totalorder %s56, %s57
      %p71 = scmp.eq.s32.totalorder %s23, 1
      %p72 = por %p70, %p71
      %p74 = scmp.ne.s32.totalorder %s57, %s73
      %p75 = scmp.eq.s32.totalorder %s23, 0
      %p76 = por %p74, %p75
      %s77 = ssub.s32 %s17, %s24
      %p78 = scmp.eq.s32.totalorder %s77, 0
      %s80 = sadd.s32 %s79, 1
      %s81 = scalar_select %p78, %s79, %s80
      %p84 = pneg %p78
      %p85 = scmp.eq.s32.totalorder %s17, 1
      %p86 = por %p84, %p85
      %p87 = scmp.ne.s32.totalorder %s79, %s82
      %p88 = scmp.eq.s32.totalorder %s17, 0
      %p89 = por %p87, %p88
      %p90 = scmp.ne.s32.totalorder %s79, %s82
      %p91 = scmp.eq.s32.totalorder %s22, 1
      %p92 = por %p90, %p91
      %p93 = scmp.ne.s32.totalorder %s82, %s83
      %p94 = scmp.eq.s32.totalorder %s22, 0
      %p95 = por %p93, %p94
      %p96 = scmp.ne.s32.totalorder %s82, %s83
      %p97 = scmp.eq.s32.totalorder %s23, 1
      %p98 = por %p96, %p97
      %p100 = scmp.ne.s32.totalorder %s83, %s99
      %p101 = scmp.eq.s32.totalorder %s23, 0
      %p102 = por %p100, %p101
      %p103 = scmp.le.s32.totalorder 1, %s17
      %p104 = scmp.lt.s32.totalorder %s17, 3
      %p105 = pnand %p103, %p104
      %p106 = pneg %p105
      // Predicated region
      $region9: #{tpu_custom_call.1} parent=5 // pred_check
        _
      $region10: #{tpu_custom_call.1} parent=5 // pred_check_branch
        %108 = sbr.rel (%p105) target = $region12
      $region11: #{tpu_custom_call.1} parent=5 // pred_region
        %s109 = ssub.s32 %s17, 1
      $region12: #{tpu_custom_call.1} parent=5 // pred_fallthru
        _
      %p110 = scmp.lt.s32.totalorder %s17, 2
      // Predicated region
      $region13: #{tpu_custom_call.1} parent=5 // pred_check
        %p111 = pneg %p110
      $region14: #{tpu_custom_call.1} parent=5 // pred_check_branch
        %113 = sbr.rel (%p111) target = $region16
      $region15: #{tpu_custom_call.1} parent=5 // pred_region
        // Predicated region
        $region17: #{tpu_custom_call.1} parent=15 // pred_check
          %p114 = pneg %p37
        $region18: #{tpu_custom_call.1} parent=15 // pred_check_branch
          %116 = sbr.rel (%p114) target = $region20
        $region19: #{tpu_custom_call.1} parent=15 // pred_region
          %s117 = sand.u32 %s27, 1
          %s118 = scalar_lea.sflag [#allocation3], %s117
          %s119 = sand.u32 %s27, 1
          %s120 = smul.addr %s119, 192
          %s121 = scalar_lea.vmem [#allocation2], %s120
          %s122 = smul.u32 24, %s17
          %s124 = ssub.s32 3072, 3072
          %125 = vsyncadd %s118, %s124
          %s126 = smul.addr %s122, 128
          %s127 = scalar_lea.hbm %s0, %s126
          %s128 = sshll.u32 %s121, 4
          %s129 = int_to_ptr.vmem [resolvable:$true] %s128
          %134 = dma.hbm_to_vmem [thread:$0]  %s127, 3072, %s129, %s118, 128, 128, 8
        $region20: #{tpu_custom_call.1} parent=15 // pred_fallthru
          _
        // Predicated region
        $region21: #{tpu_custom_call.1} parent=15 // pred_check
          %p135 = pneg %p63
        $region22: #{tpu_custom_call.1} parent=15 // pred_check_branch
          %137 = sbr.rel (%p135) target = $region24
        $region23: #{tpu_custom_call.1} parent=15 // pred_region
          %s138 = sand.u32 %s53, 1
          %s139 = scalar_lea.sflag [#allocation6], %s138
          %s140 = sand.u32 %s53, 1
          %s141 = smul.addr %s140, 24
          %s142 = scalar_lea.vmem [#allocation5], %s141
          %s143 = smul.u32 24, %s17
          %s144 = ssub.s32 50, %s143
          %p145 = scmp.lt.s32.totalorder %s144, 24
          %s146 = scalar_select %p145, %s144, 24
          %s147 = smul.u32 16, %s146
          %s149 = ssub.s32 384, %s147
          %150 = vsyncadd %s139, %s149
          %p151 = scmp.ne.s32.totalorder 0, %s147
          %s152 = smul.addr %s143, 16
          %s153 = scalar_lea.hbm %s1, %s152
          %s154 = sshll.u32 %s142, 4
          %s155 = int_to_ptr.vmem [resolvable:$true] %s154
          %s156 = sshll.u32 %s146, 4
          %160 = dma.hbm_to_vmem [thread:$0]  (%p151), %s153, %s156, %s155, %s139, 16, 16, 1
        $region24: #{tpu_custom_call.1} parent=15 // pred_fallthru
          _
      $region16: #{tpu_custom_call.1} parent=5 // pred_fallthru
        _
      %p161 = scmp.le.s32.totalorder 1, %s17
      %p162 = scmp.lt.s32.totalorder %s17, 3
      %p163 = pnand %p161, %p162
      %p164 = pneg %p163
      // Predicated region
      $region25: #{tpu_custom_call.1} parent=5 // pred_check
        _
      $region26: #{tpu_custom_call.1} parent=5 // pred_check_branch
        %166 = sbr.rel (%p163) target = $region28
      $region27: #{tpu_custom_call.1} parent=5 // pred_region
        %s167 = ssub.s32 %s17, 1
        %s168 = sand.u32 %s30, 1
        %s169 = scalar_lea.sflag [#allocation3], %s168
        %s170 = sand.u32 %s30, 1
        %s171 = smul.addr %s170, 192
        %s172 = scalar_lea.vmem [#allocation2], %s171
        // Predicated region
        $region29: #{tpu_custom_call.1} parent=27 // pred_check
          %p173 = pneg %p43
        $region30: #{tpu_custom_call.1} parent=27 // pred_check_branch
          %175 = sbr.rel (%p173) target = $region32
        $region31: #{tpu_custom_call.1} parent=27 // pred_region
          %176 = dma.done %s169, 3072
        $region32: #{tpu_custom_call.1} parent=27 // pred_fallthru
          _
        %s177 = sand.u32 %s56, 1
        %s178 = scalar_lea.sflag [#allocation6], %s177
        %s179 = sand.u32 %s56, 1
        %s180 = smul.addr %s179, 24
        %s181 = scalar_lea.vmem [#allocation5], %s180
        // Predicated region
        $region33: #{tpu_custom_call.1} parent=27 // pred_check
          %p182 = pneg %p69
        $region34: #{tpu_custom_call.1} parent=27 // pred_check_branch
          %184 = sbr.rel (%p182) target = $region36
        $region35: #{tpu_custom_call.1} parent=27 // pred_region
          %185 = dma.done %s178, 384
        $region36: #{tpu_custom_call.1} parent=27 // pred_fallthru
          _
        %s186 = sand.u32 %s30, 1
        %s187 = scalar_lea.sflag [#allocation3], %s186
        %s188 = sand.u32 %s30, 1
        %s189 = smul.addr %s188, 192
        %s190 = scalar_lea.vmem [#allocation2], %s189
        %p191 = pneg %p43
        %p192 = pneg %p40
        %s193 = sand.u32 %s56, 1
        %s194 = scalar_lea.sflag [#allocation6], %s193
        %s195 = sand.u32 %s56, 1
        %s196 = smul.addr %s195, 24
        %s197 = scalar_lea.vmem [#allocation5], %s196
        %p198 = pneg %p69
        %p199 = pneg %p66
        %p200 = pneg %p95
        %p201 = pneg %p92
        %s202 = sand.u32 %s82, 1
        %s203 = scalar_lea.sflag [#allocation4], %s202
        %s204 = sand.u32 %s82, 1
        %s205 = smul.addr %s204, 192
        %s206 = scalar_lea.vmem [#allocation7], %s205
        %s207 = smul.u32 24, %s22
        %s208 = smul.u32 24, %s22
        %s209 = ssub.s32 50, %s208
        %p210 = scmp.lt.s32.totalorder %s209, 24
        %s211 = scalar_select %p210, %s209, 24
        %s212 = smul.u32 16, %s211
        %s213 = smul.u32 24, %s22
        %v214 = vld [vmem:[%s172] sm:$0xff]
        %v215 = vld [vmem:[%s172 + $0x8] sm:$0xff]
        %v216 = vld [vmem:[%s172 + $0x10] sm:$0xff]
        %v217 = vld [vmem:[%s172 + $0x18] sm:$0xff]
        %v218 = vld [vmem:[%s172 + $0x20] sm:$0xff]
        %v219 = vld [vmem:[%s172 + $0x28] sm:$0xff]
        %v220 = vld [vmem:[%s172 + $0x30] sm:$0xff]
        %v221 = vld [vmem:[%s172 + $0x38] sm:$0xff]
        %v222 = vld [vmem:[%s172 + $0x40] sm:$0xff]
        %v223 = vld [vmem:[%s172 + $0x48] sm:$0xff]
        %v224 = vld [vmem:[%s172 + $0x50] sm:$0xff]
        %v225 = vld [vmem:[%s172 + $0x58] sm:$0xff]
        %v226 = vld [vmem:[%s172 + $0x60] sm:$0xff]
        %v227 = vld [vmem:[%s172 + $0x68] sm:$0xff]
        %v228 = vld [vmem:[%s172 + $0x70] sm:$0xff]
        %v229 = vld [vmem:[%s172 + $0x78] sm:$0xff]
        %v230 = vld [vmem:[%s172 + $0x80] sm:$0xff]
        %v231 = vld [vmem:[%s172 + $0x88] sm:$0xff]
        %v232 = vld [vmem:[%s172 + $0x90] sm:$0xff]
        %v233 = vld [vmem:[%s172 + $0x98] sm:$0xff]
        %v234 = vld [vmem:[%s172 + $0xa0] sm:$0xff]
        %v235 = vld [vmem:[%s172 + $0xa8] sm:$0xff]
        %v236 = vld [vmem:[%s172 + $0xb0] sm:$0xff]
        %v237 = vld [vmem:[%s172 + $0xb8] sm:$0xff]
        %v238 = vld [vmem:[%s181] sm:$0x1]
        %v239 = vld [vmem:[%s181 + $0x1] sm:$0x1]
        %v240 = vld [vmem:[%s181 + $0x2] sm:$0x1]
        %v241 = vld [vmem:[%s181 + $0x3] sm:$0x1]
        %v242 = vld [vmem:[%s181 + $0x4] sm:$0x1]
        %v243 = vld [vmem:[%s181 + $0x5] sm:$0x1]
        %v244 = vld [vmem:[%s181 + $0x6] sm:$0x1]
        %v245 = vld [vmem:[%s181 + $0x7] sm:$0x1]
        %v246 = vld [vmem:[%s181 + $0x8] sm:$0x1]
        %v247 = vld [vmem:[%s181 + $0x9] sm:$0x1]
        %v248 = vld [vmem:[%s181 + $0xa] sm:$0x1]
        %v249 = vld [vmem:[%s181 + $0xb] sm:$0x1]
        %v250 = vld [vmem:[%s181 + $0xc] sm:$0x1]
        %v251 = vld [vmem:[%s181 + $0xd] sm:$0x1]
        %v252 = vld [vmem:[%s181 + $0xe] sm:$0x1]
        %v253 = vld [vmem:[%s181 + $0xf] sm:$0x1]
        %v254 = vld [vmem:[%s181 + $0x10] sm:$0x1]
        %v255 = vld [vmem:[%s181 + $0x11] sm:$0x1]
        %v256 = vld [vmem:[%s181 + $0x12] sm:$0x1]
        %v257 = vld [vmem:[%s181 + $0x13] sm:$0x1]
        %v258 = vld [vmem:[%s181 + $0x14] sm:$0x1]
        %v259 = vld [vmem:[%s181 + $0x15] sm:$0x1]
        %v260 = vld [vmem:[%s181 + $0x16] sm:$0x1]
        %v261 = vld [vmem:[%s181 + $0x17] sm:$0x1]
        %v286 = vlaneseq
        %v287 = vshrl.u32 %v286, 7
        %v288 = vsub.s32 0, %v287
        %v289 = vrot.slane %v238, %v288
        %v290 = vlaneseq
        %v291 = vshrl.u32 %v290, 7
        %v292 = vsub.s32 0, %v291
        %v293 = vrot.slane %v239, %v292
        %v294 = vlaneseq
        %v295 = vshrl.u32 %v294, 7
        %v296 = vsub.s32 0, %v295
        %v297 = vrot.slane %v240, %v296
        %v298 = vlaneseq
        %v299 = vshrl.u32 %v298, 7
        %v300 = vsub.s32 0, %v299
        %v301 = vrot.slane %v241, %v300
        %v302 = vlaneseq
        %v303 = vshrl.u32 %v302, 7
        %v304 = vsub.s32 0, %v303
        %v305 = vrot.slane %v242, %v304
        %v306 = vlaneseq
        %v307 = vshrl.u32 %v306, 7
        %v308 = vsub.s32 0, %v307
        %v309 = vrot.slane %v243, %v308
        %v310 = vlaneseq
        %v311 = vshrl.u32 %v310, 7
        %v312 = vsub.s32 0, %v311
        %v313 = vrot.slane %v244, %v312
        %v314 = vlaneseq
        %v315 = vshrl.u32 %v314, 7
        %v316 = vsub.s32 0, %v315
        %v317 = vrot.slane %v245, %v316
        %v318 = vlaneseq
        %v319 = vshrl.u32 %v318, 7
        %v320 = vsub.s32 0, %v319
        %v321 = vrot.slane %v246, %v320
        %v322 = vlaneseq
        %v323 = vshrl.u32 %v322, 7
        %v324 = vsub.s32 0, %v323
        %v325 = vrot.slane %v247, %v324
        %v326 = vlaneseq
        %v327 = vshrl.u32 %v326, 7
        %v328 = vsub.s32 0, %v327
        %v329 = vrot.slane %v248, %v328
        %v330 = vlaneseq
        %v331 = vshrl.u32 %v330, 7
        %v332 = vsub.s32 0, %v331
        %v333 = vrot.slane %v249, %v332
        %v334 = vlaneseq
        %v335 = vshrl.u32 %v334, 7
        %v336 = vsub.s32 0, %v335
        %v337 = vrot.slane %v250, %v336
        %v338 = vlaneseq
        %v339 = vshrl.u32 %v338, 7
        %v340 = vsub.s32 0, %v339
        %v341 = vrot.slane %v251, %v340
        %v342 = vlaneseq
        %v343 = vshrl.u32 %v342, 7
        %v344 = vsub.s32 0, %v343
        %v345 = vrot.slane %v252, %v344
        %v346 = vlaneseq
        %v347 = vshrl.u32 %v346, 7
        %v348 = vsub.s32 0, %v347
        %v349 = vrot.slane %v253, %v348
        %v350 = vlaneseq
        %v351 = vshrl.u32 %v350, 7
        %v352 = vsub.s32 0, %v351
        %v353 = vrot.slane %v254, %v352
        %v354 = vlaneseq
        %v355 = vshrl.u32 %v354, 7
        %v356 = vsub.s32 0, %v355
        %v357 = vrot.slane %v255, %v356
        %v358 = vlaneseq
        %v359 = vshrl.u32 %v358, 7
        %v360 = vsub.s32 0, %v359
        %v361 = vrot.slane %v256, %v360
        %v362 = vlaneseq
        %v363 = vshrl.u32 %v362, 7
        %v364 = vsub.s32 0, %v363
        %v365 = vrot.slane %v257, %v364
        %v366 = vlaneseq
        %v367 = vshrl.u32 %v366, 7
        %v368 = vsub.s32 0, %v367
        %v369 = vrot.slane %v258, %v368
        %v370 = vlaneseq
        %v371 = vshrl.u32 %v370, 7
        %v372 = vsub.s32 0, %v371
        %v373 = vrot.slane %v259, %v372
        %v374 = vlaneseq
        %v375 = vshrl.u32 %v374, 7
        %v376 = vsub.s32 0, %v375
        %v377 = vrot.slane %v260, %v376
        %v378 = vlaneseq
        %v379 = vshrl.u32 %v378, 7
        %v380 = vsub.s32 0, %v379
        %v381 = vrot.slane %v261, %v380
        %v406 = vadd.f32 %v214, %v289
        %v407 = vadd.f32 %v215, %v293
        %v408 = vadd.f32 %v216, %v297
        %v409 = vadd.f32 %v217, %v301
        %v410 = vadd.f32 %v218, %v305
        %v411 = vadd.f32 %v219, %v309
        %v412 = vadd.f32 %v220, %v313
        %v413 = vadd.f32 %v221, %v317
        %v414 = vadd.f32 %v222, %v321
        %v415 = vadd.f32 %v223, %v325
        %v416 = vadd.f32 %v224, %v329
        %v417 = vadd.f32 %v225, %v333
        %v418 = vadd.f32 %v226, %v337
        %v419 = vadd.f32 %v227, %v341
        %v420 = vadd.f32 %v228, %v345
        %v421 = vadd.f32 %v229, %v349
        %v422 = vadd.f32 %v230, %v353
        %v423 = vadd.f32 %v231, %v357
        %v424 = vadd.f32 %v232, %v361
        %v425 = vadd.f32 %v233, %v365
        %v426 = vadd.f32 %v234, %v369
        %v427 = vadd.f32 %v235, %v373
        %v428 = vadd.f32 %v236, %v377
        %v429 = vadd.f32 %v237, %v381
        %430 = vst [vmem:[%s206] sm:$0xff] %v406
        %431 = vst [vmem:[%s206 + $0x8] sm:$0xff] %v407
        %432 = vst [vmem:[%s206 + $0x10] sm:$0xff] %v408
        %433 = vst [vmem:[%s206 + $0x18] sm:$0xff] %v409
        %434 = vst [vmem:[%s206 + $0x20] sm:$0xff] %v410
        %435 = vst [vmem:[%s206 + $0x28] sm:$0xff] %v411
        %436 = vst [vmem:[%s206 + $0x30] sm:$0xff] %v412
        %437 = vst [vmem:[%s206 + $0x38] sm:$0xff] %v413
        %438 = vst [vmem:[%s206 + $0x40] sm:$0xff] %v414
        %439 = vst [vmem:[%s206 + $0x48] sm:$0xff] %v415
        %440 = vst [vmem:[%s206 + $0x50] sm:$0xff] %v416
        %441 = vst [vmem:[%s206 + $0x58] sm:$0xff] %v417
        %442 = vst [vmem:[%s206 + $0x60] sm:$0xff] %v418
        %443 = vst [vmem:[%s206 + $0x68] sm:$0xff] %v419
        %444 = vst [vmem:[%s206 + $0x70] sm:$0xff] %v420
        %445 = vst [vmem:[%s206 + $0x78] sm:$0xff] %v421
        %446 = vst [vmem:[%s206 + $0x80] sm:$0xff] %v422
        %447 = vst [vmem:[%s206 + $0x88] sm:$0xff] %v423
        %448 = vst [vmem:[%s206 + $0x90] sm:$0xff] %v424
        %449 = vst [vmem:[%s206 + $0x98] sm:$0xff] %v425
        %450 = vst [vmem:[%s206 + $0xa0] sm:$0xff] %v426
        %451 = vst [vmem:[%s206 + $0xa8] sm:$0xff] %v427
        %452 = vst [vmem:[%s206 + $0xb0] sm:$0xff] %v428
        %453 = vst [vmem:[%s206 + $0xb8] sm:$0xff] %v429
        %s454 = sand.u32 %s82, 1
        %s455 = scalar_lea.sflag [#allocation4], %s454
        %s456 = sand.u32 %s82, 1
        %s457 = smul.addr %s456, 192
        %s458 = scalar_lea.vmem [#allocation7], %s457
        // Predicated region
        $region37: #{tpu_custom_call.1} parent=27 // pred_check
          %p459 = pneg %p92
        $region38: #{tpu_custom_call.1} parent=27 // pred_check_branch
          %461 = sbr.rel (%p459) target = $region40
        $region39: #{tpu_custom_call.1} parent=27 // pred_region
          %s462 = smul.u32 24, %s22
          %s464 = ssub.s32 3072, 3072
          %465 = vsyncadd %s455, %s464
          %s466 = smul.addr %s462, 128
          %s467 = scalar_lea.hbm %s2, %s466
          %s468 = sshll.u32 %s458, 4
          %s469 = int_to_ptr.vmem [resolvable:$true] %s468
          %474 = dma.vmem_to_hbm [thread:$0]  %s469, 3072, %s467, %s455, 128, 128, 8
        $region40: #{tpu_custom_call.1} parent=27 // pred_fallthru
          _
      $region28: #{tpu_custom_call.1} parent=5 // pred_fallthru
        _
      %p475 = scmp.le.s32.totalorder 2, %s17
      // Predicated region
      $region41: #{tpu_custom_call.1} parent=5 // pred_check
        %p476 = pneg %p475
      $region42: #{tpu_custom_call.1} parent=5 // pred_check_branch
        %478 = sbr.rel (%p476) target = $region44
      $region43: #{tpu_custom_call.1} parent=5 // pred_region
        %s479 = ssub.s32 %s17, 2
        // Predicated region
        $region45: #{tpu_custom_call.1} parent=43 // pred_check
          %p480 = pneg %p98
        $region46: #{tpu_custom_call.1} parent=43 // pred_check_branch
          %482 = sbr.rel (%p480) target = $region48
        $region47: #{tpu_custom_call.1} parent=43 // pred_region
          %s483 = sand.u32 %s83, 1
          %s484 = scalar_lea.sflag [#allocation4], %s483
          %s485 = sand.u32 %s83, 1
          %s486 = smul.addr %s485, 192
          %s487 = scalar_lea.vmem [#allocation7], %s486
          %488 = dma.done %s484, 3072
        $region48: #{tpu_custom_call.1} parent=43 // pred_fallthru
          _
      $region44: #{tpu_custom_call.1} parent=5 // pred_fallthru
        _
    $region6: #{tpu_custom_call.1} parent=1 // loop_footer
      %s21 = sadd.s32 1, %s17
    $region7: #{tpu_custom_call.1} parent=1 // loop_footer_branch
      %16 = sbr.rel target = $region3
    $region8: #{tpu_custom_call.1} parent=1 // loop_exit
      _
    %489 = vsyncpa [#allocation3], 1
    %s490 = scalar_lea.sflag [#allocation3], 1
    %491 = vsyncpa %s490, 1
    %492 = vsyncpa [#allocation6], 1
    %s493 = scalar_lea.sflag [#allocation6], 1
    %494 = vsyncpa %s493, 1
    %495 = vsyncpa [#allocation4], 1
    %s496 = scalar_lea.sflag [#allocation4], 1
    %497 = vsyncpa %s496, 1

</llo_original>
